<compile_context>
chip_gen: v7x
topology: tpu7x:2x2x1
jax: 0.10.0
libtpu: 0.0.40
codegen_flags: <defaults>
</compile_context>

<pallas_src>
import functools

import jax
import jax.numpy as jnp
from jax.experimental import pallas as pl
from jax.experimental.pallas import tpu as pltpu

LANE = 128


def _round_up(x, m):
    return (x + m - 1) // m * m


def _softplus(x):
    # Matches torch.nn.Softplus(beta=1, threshold=20):
    #   x > 20 -> x, else log(1 + exp(x))
    safe = jnp.minimum(x, 20.0)
    return jnp.where(x > 20.0, x, jnp.log1p(jnp.exp(safe)))


def _mqenet_kernel(z_ref, w1_ref, b1_ref, w2_ref, b2_ref,
                   mean_ref, sigma_ref, *, feat_dim):
    z = z_ref[...]                                              # [tm, z_dim]

    # Fused first layers of both branches: one MXU pass + one ReLU.
    h = jnp.dot(z, w1_ref[...], preferred_element_type=jnp.float32) + b1_ref[...]
    h = jnp.maximum(h, 0.0)                                     # padded lanes stay 0

    # Fused (block-diagonal) second layers: one MXU pass.
    s = jnp.dot(h, w2_ref[...], preferred_element_type=jnp.float32) + b2_ref[...]

    # Compact outputs: mean columns and the (softplus'd) sigma column.
    mean_ref[...] = s[:, :feat_dim].astype(mean_ref.dtype)
    sigma_ref[...] = _softplus(s[:, feat_dim:feat_dim + 1]).astype(sigma_ref.dtype)


def _choose_tile(Bp, tm_max):
    """Pick the batch tile.

    Small batches run as one step (overhead already negligible).  Larger
    batches use the biggest tile <= tm_max (amortize ~0.35us/step), but keep
    at least 2 grid steps so the 'parallel' axis can shard across v7x's two
    TensorCores.
    """
    if Bp <= 1024:
        return Bp
    return min(tm_max, _round_up(pl.cdiv(Bp, 2), 8))


def mqenet_forward(Z, packed, *, tm_max=4096):
    """Z: [B, z_dim] float32. packed: dict from pack_params()."""
    B, z_dim = Z.shape
    W1, b1, W2, b2 = packed["W1"], packed["b1"], packed["W2"], packed["b2"]
    feat_dim = packed["feat_dim"]
    H_pad = W1.shape[1]
    O_pad = W2.shape[1]

    # Pad the batch only to a sublane multiple (8); ragged last tile is
    # handled by the cdiv grid (OOB rows are discarded on store).
    Bp = _round_up(B, 8)
    if Bp != B:
        Z = jnp.pad(Z, ((0, Bp - B), (0, 0)))

    tm = _choose_tile(Bp, tm_max)
    grid = (pl.cdiv(Bp, tm),)

    kernel = functools.partial(_mqenet_kernel, feat_dim=feat_dim)

    mean, sigma = pl.pallas_call(
        kernel,
        out_shape=(
            jax.ShapeDtypeStruct((Bp, feat_dim), jnp.float32),
            jax.ShapeDtypeStruct((Bp, 1), jnp.float32),
        ),
        grid=grid,
        in_specs=[
            pl.BlockSpec((tm, z_dim), lambda i: (i, 0)),      # Z tile per grid step
            pl.BlockSpec((z_dim, H_pad), lambda i: (0, 0)),   # weights stay resident
            pl.BlockSpec((1, H_pad), lambda i: (0, 0)),
            pl.BlockSpec((H_pad, O_pad), lambda i: (0, 0)),
            pl.BlockSpec((1, O_pad), lambda i: (0, 0)),
        ],
        out_specs=(
            pl.BlockSpec((tm, feat_dim), lambda i: (i, 0)),   # compact mean
            pl.BlockSpec((tm, 1), lambda i: (i, 0)),          # compact sigma
        ),
        compiler_params=pltpu.CompilerParams(
            dimension_semantics=("parallel",)),
    )(Z, W1, b1, W2, b2)

    if Bp != B:
        mean, sigma = mean[:B], sigma[:B]
    return mean, sigma


def init_params(key, z_dim, feat_dim, hid_dim):
    """Deterministic init mimicking nn.Linear's U(-1/sqrt(fan_in), +)."""
    ks = jax.random.split(key, 8)

    def lin(kw, kb, fan_in, fan_out):
        bound = 1.0 / jnp.sqrt(fan_in)
        # stored as [in, out] (transposed vs torch's [out, in])
        w = jax.random.uniform(kw, (fan_in, fan_out), jnp.float32, -bound, bound)
        b = jax.random.uniform(kb, (1, fan_out), jnp.float32, -bound, bound)
        return w, b

    w1e, b1e = lin(ks[0], ks[1], z_dim, hid_dim[0])
    w2e, b2e = lin(ks[2], ks[3], hid_dim[0], feat_dim)
    w1q, b1q = lin(ks[4], ks[5], z_dim, hid_dim[1])
    w2q, b2q = lin(ks[6], ks[7], hid_dim[1], 1)
    return dict(w1e=w1e, b1e=b1e, w2e=w2e, b2e=b2e,
                w1q=w1q, b1q=b1q, w2q=w2q, b2q=b2q)


def pack_params(p, z_dim, feat_dim, hid_dim):
    """Fuse + zero-pad the per-layer params into 128-lane-aligned tensors."""
    hid0, hid1 = hid_dim
    H_pad = _round_up(hid0 + hid1, LANE)
    O_pad = _round_up(feat_dim + 1, LANE)

    W1 = jnp.zeros((z_dim, H_pad), jnp.float32)
    W1 = W1.at[:, :hid0].set(p["w1e"]).at[:, hid0:hid0 + hid1].set(p["w1q"])
    b1 = jnp.zeros((1, H_pad), jnp.float32)
    b1 = b1.at[:, :hid0].set(p["b1e"]).at[:, hid0:hid0 + hid1].set(p["b1q"])

    # Block-diagonal packing: mean columns fed only by the E-branch hidden,
    # sigma column fed only by the Q-branch hidden.
    W2 = jnp.zeros((H_pad, O_pad), jnp.float32)
    W2 = W2.at[:hid0, :feat_dim].set(p["w2e"])
    W2 = W2.at[hid0:hid0 + hid1, feat_dim:feat_dim + 1].set(p["w2q"])
    b2 = jnp.zeros((1, O_pad), jnp.float32)
    b2 = b2.at[:, :feat_dim].set(p["b2e"]).at[:, feat_dim:feat_dim + 1].set(p["b2q"])

    return dict(W1=W1, b1=b1, W2=W2, b2=b2, feat_dim=feat_dim)


def reference_forward(Z, p):
    h_e = jnp.maximum(Z @ p["w1e"] + p["b1e"], 0.0)
    mean = h_e @ p["w2e"] + p["b2e"]
    h_q = jnp.maximum(Z @ p["w1q"] + p["b1q"], 0.0)
    s = h_q @ p["w2q"] + p["b2q"]
    sigma = jnp.where(s > 20.0, s, jnp.log1p(jnp.exp(jnp.minimum(s, 20.0))))
    return mean, sigma


if __name__ == "__main__":
    z_dim, feat_dim, hid_dim = 16, 16, (32, 32)
    B = 8

    key = jax.random.PRNGKey(0)
    k_z, k_p = jax.random.split(key)
    Z = jax.random.normal(k_z, (B, z_dim), jnp.float32)
    params = init_params(k_p, z_dim, feat_dim, hid_dim)
    packed = pack_params(params, z_dim, feat_dim, hid_dim)

    mean, sigma = mqenet_forward(Z, packed)
    jax.block_until_ready((mean, sigma))

    ref_mean, ref_sigma = reference_forward(Z, params)
    assert mean.shape == (B, feat_dim) and sigma.shape == (B, 1)
    assert jnp.allclose(mean, ref_mean, atol=1e-5, rtol=1e-5)
    assert jnp.allclose(sigma, ref_sigma, atol=1e-5, rtol=1e-5)
    assert bool(jnp.all(sigma > 0.0))  # softplus output is positive

    print("KERNEL_OK")
</pallas_src>

<mosaic_0001>
module attributes {stable_mosaic.version = 11 : i64} {
  func.func @_mqenet_kernel(%arg0: i32, %arg1: memref<8x16xf32, #tpu.memory_space<vmem>>, %arg2: memref<16x128xf32, #tpu.memory_space<vmem>>, %arg3: memref<1x128xf32, #tpu.memory_space<vmem>>, %arg4: memref<128x128xf32, #tpu.memory_space<vmem>>, %arg5: memref<1x128xf32, #tpu.memory_space<vmem>>, %arg6: memref<8x16xf32, #tpu.memory_space<vmem>>, %arg7: memref<8x1xf32, #tpu.memory_space<vmem>>) attributes {dimension_semantics = [#tpu.dimension_semantics<parallel>], iteration_bounds = array<i64: 1>, scalar_prefetch = 0 : i64, scratch_operands = 0 : i64, tpu.core_type = #tpu.core_type<tc>, window_params = [{transform_indices = @transform_0, window_bounds = array<i64: 8, 16>}, {pipeline_mode = #tpu.pipeline_mode<synchronous>, transform_indices = @transform_1, window_bounds = array<i64: 16, 128>}, {pipeline_mode = #tpu.pipeline_mode<synchronous>, transform_indices = @transform_2, window_bounds = array<i64: 1, 128>}, {pipeline_mode = #tpu.pipeline_mode<synchronous>, transform_indices = @transform_3, window_bounds = array<i64: 128, 128>}, {pipeline_mode = #tpu.pipeline_mode<synchronous>, transform_indices = @transform_4, window_bounds = array<i64: 1, 128>}, {transform_indices = @transform_5, window_bounds = array<i64: 8, 16>}, {transform_indices = @transform_6, window_bounds = array<i64: 8, 1>}]} {
    %c0 = arith.constant 0 : index
    %c0_0 = arith.constant 0 : index
    %0 = vector.load %arg1[%c0, %c0_0] : memref<8x16xf32, #tpu.memory_space<vmem>>, vector<8x16xf32>
    %c0_1 = arith.constant 0 : index
    %c0_2 = arith.constant 0 : index
    %1 = vector.load %arg2[%c0_1, %c0_2] : memref<16x128xf32, #tpu.memory_space<vmem>>, vector<16x128xf32>
    %cst = arith.constant dense<0.000000e+00> : vector<8x128xf32>
    %2 = tpu.matmul %0, %1, %cst {dimension_numbers = #tpu.dot_dimension_numbers<[1], [0], [0], [1], [0, 0, 1, 1], [], []>} : vector<8x16xf32>, vector<16x128xf32>, vector<8x128xf32> -> vector<8x128xf32>
    %c0_3 = arith.constant 0 : index
    %c0_4 = arith.constant 0 : index
    %3 = vector.load %arg3[%c0_3, %c0_4] : memref<1x128xf32, #tpu.memory_space<vmem>>, vector<1x128xf32>
    %4 = vector.broadcast %3 : vector<1x128xf32> to vector<8x128xf32>
    %5 = arith.addf %2, %4 : vector<8x128xf32>
    %cst_5 = arith.constant 0.000000e+00 : f32
    %6 = vector.broadcast %cst_5 : f32 to vector<8x128xf32>
    %7 = arith.maximumf %5, %6 : vector<8x128xf32>
    %c0_6 = arith.constant 0 : index
    %c0_7 = arith.constant 0 : index
    %8 = vector.load %arg4[%c0_6, %c0_7] : memref<128x128xf32, #tpu.memory_space<vmem>>, vector<128x128xf32>
    %cst_8 = arith.constant dense<0.000000e+00> : vector<8x128xf32>
    %9 = tpu.matmul %7, %8, %cst_8 {dimension_numbers = #tpu.dot_dimension_numbers<[1], [0], [0], [1], [0, 0, 1, 1], [], []>} : vector<8x128xf32>, vector<128x128xf32>, vector<8x128xf32> -> vector<8x128xf32>
    %c0_9 = arith.constant 0 : index
    %c0_10 = arith.constant 0 : index
    %10 = vector.load %arg5[%c0_9, %c0_10] : memref<1x128xf32, #tpu.memory_space<vmem>>, vector<1x128xf32>
    %11 = vector.broadcast %10 : vector<1x128xf32> to vector<8x128xf32>
    %12 = arith.addf %9, %11 : vector<8x128xf32>
    %13 = vector.extract_strided_slice %12 {offsets = [0, 0], sizes = [8, 16], strides = [1, 1]} : vector<8x128xf32> to vector<8x16xf32>
    %c0_11 = arith.constant 0 : index
    %c0_12 = arith.constant 0 : index
    %14 = vector.load %arg6[%c0_11, %c0_12] : memref<8x16xf32, #tpu.memory_space<vmem>>, vector<8x16xf32>
    tpu.vector_store %arg6[%c0_11, %c0_12], %13 {strides = array<i32>} : memref<8x16xf32, #tpu.memory_space<vmem>>, vector<8x16xf32>,
    %15 = vector.extract_strided_slice %12 {offsets = [0, 16], sizes = [8, 1], strides = [1, 1]} : vector<8x128xf32> to vector<8x1xf32>
    %cst_13 = arith.constant 2.000000e+01 : f32
    %16 = vector.broadcast %cst_13 : f32 to vector<8x1xf32>
    %17 = arith.minimumf %15, %16 : vector<8x1xf32>
    %cst_14 = arith.constant 2.000000e+01 : f32
    %18 = vector.broadcast %cst_14 : f32 to vector<8x1xf32>
    %19 = arith.cmpf ogt, %15, %18 : vector<8x1xf32>
    %20 = math.exp %17 : vector<8x1xf32>
    %21 = math.log1p %20 : vector<8x1xf32>
    %22 = arith.select %19, %15, %21 : vector<8x1xi1>, vector<8x1xf32>
    %c0_15 = arith.constant 0 : index
    %c0_16 = arith.constant 0 : index
    %23 = vector.load %arg7[%c0_15, %c0_16] : memref<8x1xf32, #tpu.memory_space<vmem>>, vector<8x1xf32>
    tpu.vector_store %arg7[%c0_15, %c0_16], %22 {strides = array<i32>} : memref<8x1xf32, #tpu.memory_space<vmem>>, vector<8x1xf32>,
    return
  }
  func.func @transform_0(%arg0: i32) -> (i32, i32) {
    %c0_i32 = arith.constant 0 : i32
    %c0_i32_0 = arith.constant 0 : i32
    return %arg0, %c0_i32 : i32, i32
  }
  func.func @transform_1(%arg0: i32) -> (i32, i32) {
    %c0_i32 = arith.constant 0 : i32
    %c0_i32_0 = arith.constant 0 : i32
    %c0_i32_1 = arith.constant 0 : i32
    return %c0_i32, %c0_i32_0 : i32, i32
  }
  func.func @transform_2(%arg0: i32) -> (i32, i32) {
    %c0_i32 = arith.constant 0 : i32
    %c0_i32_0 = arith.constant 0 : i32
    %c0_i32_1 = arith.constant 0 : i32
    return %c0_i32, %c0_i32_0 : i32, i32
  }
  func.func @transform_3(%arg0: i32) -> (i32, i32) {
    %c0_i32 = arith.constant 0 : i32
    %c0_i32_0 = arith.constant 0 : i32
    %c0_i32_1 = arith.constant 0 : i32
    return %c0_i32, %c0_i32_0 : i32, i32
  }
  func.func @transform_4(%arg0: i32) -> (i32, i32) {
    %c0_i32 = arith.constant 0 : i32
    %c0_i32_0 = arith.constant 0 : i32
    %c0_i32_1 = arith.constant 0 : i32
    return %c0_i32, %c0_i32_0 : i32, i32
  }
  func.func @transform_5(%arg0: i32) -> (i32, i32) {
    %c0_i32 = arith.constant 0 : i32
    %c0_i32_0 = arith.constant 0 : i32
    return %arg0, %c0_i32 : i32, i32
  }
  func.func @transform_6(%arg0: i32) -> (i32, i32) {
    %c0_i32 = arith.constant 0 : i32
    %c0_i32_0 = arith.constant 0 : i32
    return %arg0, %c0_i32 : i32, i32
  }
}

</mosaic_0001>

<llo_original>
// kernel: tpu_custom_call.1
$region0: #{tpu_custom_call.1}
  #allocation0 [shape = 'u32[]', space=smem, size = 0x4, offset = 0x4, fixed_abs, tag = 'smem constant byte address 0x4 - core index']
  #allocation1 [shape = 'u32[144,128]{1,0:T(1,128)}', space=vmem, size = 0x12000, scoped, tag = 'internal scratch']
  %s0 = inlined_call_operand.hbm [shape: f32[8,16], index: 0, kind: input, shape index: {}]
  %s1 = inlined_call_operand.hbm [shape: f32[16,128], index: 1, kind: input, shape index: {}]
  %s2 = inlined_call_operand.vmem [shape: f32[1,128], index: 2, kind: input, shape index: {}]
  %s3 = inlined_call_operand.hbm [shape: f32[128,128], index: 3, kind: input, shape index: {}]
  %s4 = inlined_call_operand.vmem [shape: f32[1,128], index: 4, kind: input, shape index: {}]
  %s5 = inlined_call_operand.hbm [shape: f32[8,16], index: 5, kind: output, shape index: {0}]
  %s6 = inlined_call_operand.vmem [shape: f32[8,1], index: 6, kind: output, shape index: {1}]
  %7 = xla_tuple %s5, %s6
  %s8 = sld [smem:[#allocation0]]
  $region50: #{tpu_custom_call.1} parent=0
    _
  %s10 = ssub.s32 1, %s8
  %s11 = scalar_select 0, %s10, %s8
  $region1: #{tpu_custom_call.1} parent=0
    #allocation2 [shape = 'u8[4096]{0}', space=vmem, size = 0x1000, scoped, tag = 'input window, operand 0, single buffered']
    #allocation3 [shape = 's32[1]{0}', space=sflag, size = 0x4, scoped, tag = 'scoped memory for tpu_custom_call.1']
    #allocation4 [shape = 's32[1]{0}', space=sflag, size = 0x4, scoped, tag = 'scoped memory for tpu_custom_call.1']
    #allocation5 [shape = 'u8[8192]{0}', space=vmem, size = 0x2000, scoped, tag = 'input window, operand 1, single buffered']
    #allocation6 [shape = 's32[1]{0}', space=sflag, size = 0x4, scoped, tag = 'scoped memory for tpu_custom_call.1']
    #allocation7 [shape = 'u8[65536]{0}', space=vmem, size = 0x10000, scoped, tag = 'input window, operand 3, single buffered']
    #allocation8 [shape = 'u8[4096]{0}', space=vmem, size = 0x1000, scoped, tag = 'output window, operand 0, single buffered']
    %12 = vsyncpa [#allocation3], 0
    %13 = vsyncpa [#allocation6], 0
    %14 = vsyncpa [#allocation4], 0
    // Predicated region
    $region2: #{tpu_custom_call.1} parent=1 // pred_check
      _
    $region3: #{tpu_custom_call.1} parent=1 // pred_check_branch
      %16 = sbr.rel (0) target = $region5
    $region4: #{tpu_custom_call.1} parent=1 // pred_region
      %s18 = ssub.s32 128, 128
      %19 = vsyncadd [#allocation3], %s18
      %s21 = sshll.u32 [#allocation2], 4
      %s22 = int_to_ptr.vmem [resolvable:$true] %s21
      %24 = dma.hbm_to_vmem [thread:$0]  %s0, 128, %s22, [#allocation3]
    $region5: #{tpu_custom_call.1} parent=1 // pred_fallthru
      _
    // Predicated region
    $region6: #{tpu_custom_call.1} parent=1 // pred_check
      _
    $region7: #{tpu_custom_call.1} parent=1 // pred_check_branch
      %26 = sbr.rel (0) target = $region9
    $region8: #{tpu_custom_call.1} parent=1 // pred_region
      %s28 = ssub.s32 256, 256
      %29 = vsyncadd [#allocation6], %s28
      %s30 = sshll.u32 [#allocation5], 4
      %s31 = int_to_ptr.vmem [resolvable:$true] %s30
      %36 = dma.hbm_to_vmem [thread:$0]  %s1, 256, %s31, [#allocation6], 128, 128, 8
    $region9: #{tpu_custom_call.1} parent=1 // pred_fallthru
      _
    // Predicated region
    $region10: #{tpu_custom_call.1} parent=1 // pred_check
      _
    $region11: #{tpu_custom_call.1} parent=1 // pred_check_branch
      %38 = sbr.rel (0) target = $region13
    $region12: #{tpu_custom_call.1} parent=1 // pred_region
      _
    $region13: #{tpu_custom_call.1} parent=1 // pred_fallthru
      _
    // Predicated region
    $region14: #{tpu_custom_call.1} parent=1 // pred_check
      _
    $region15: #{tpu_custom_call.1} parent=1 // pred_check_branch
      %40 = sbr.rel (0) target = $region17
    $region16: #{tpu_custom_call.1} parent=1 // pred_region
      %s42 = ssub.s32 2048, 2048
      %43 = vsyncadd [#allocation6], %s42
      %s44 = sshll.u32 [#allocation7], 4
      %s45 = int_to_ptr.vmem [resolvable:$true] %s44
      %50 = dma.hbm_to_vmem [thread:$0]  %s3, 2048, %s45, [#allocation6], 128, 128, 8
    $region17: #{tpu_custom_call.1} parent=1 // pred_fallthru
      _
    // Predicated region
    $region18: #{tpu_custom_call.1} parent=1 // pred_check
      _
    $region19: #{tpu_custom_call.1} parent=1 // pred_check_branch
      %52 = sbr.rel (0) target = $region21
    $region20: #{tpu_custom_call.1} parent=1 // pred_region
      _
    $region21: #{tpu_custom_call.1} parent=1 // pred_fallthru
      _
    // Predicated region
    $region22: #{tpu_custom_call.1} parent=1 // pred_check
      _
    $region23: #{tpu_custom_call.1} parent=1 // pred_check_branch
      %54 = sbr.rel (0) target = $region25
    $region24: #{tpu_custom_call.1} parent=1 // pred_region
      %55 = dma.done [#allocation3], 128
    $region25: #{tpu_custom_call.1} parent=1 // pred_fallthru
      _
    // Predicated region
    $region26: #{tpu_custom_call.1} parent=1 // pred_check
      _
    $region27: #{tpu_custom_call.1} parent=1 // pred_check_branch
      %57 = sbr.rel (0) target = $region29
    $region28: #{tpu_custom_call.1} parent=1 // pred_region
      %58 = dma.done [#allocation6], 256
    $region29: #{tpu_custom_call.1} parent=1 // pred_fallthru
      _
    // Predicated region
    $region30: #{tpu_custom_call.1} parent=1 // pred_check
      _
    $region31: #{tpu_custom_call.1} parent=1 // pred_check_branch
      %60 = sbr.rel (0) target = $region33
    $region32: #{tpu_custom_call.1} parent=1 // pred_region
      %61 = dma.done [#allocation6], 2048
    $region33: #{tpu_custom_call.1} parent=1 // pred_fallthru
      _
    %v62 = vld [vmem:[#allocation2] sm:$0xff]
    %v63 = vld [vmem:[#allocation5] sm:$0xff]
    %v64 = vld [vmem:[#allocation5 + $0x8] sm:$0xff]
    %v65 = vld [vmem:[%s2] sm:$0x1]
    %v67 = vlaneseq
    %v68 = vshrl.u32 %v67, 7
    %v69 = vsub.s32 0, %v68
    %v70 = vrot.slane %v65, %v69
    %vm72 = vcmask 130048
    %v74 = vsel %vm72, %v62, 0
    %76 = vmatprep.subr.mxu0 0.0
    %77 = vmatpush1.msra.mxu0 %v63
    %78 = vmatprep.subr.mxu0 0.0
    %79 = vmatpush1.msra.mxu0 %v64
    %80 = vmatprep.subr.mxu0 0.0
    %81 = vmatpush1.msra.mxu0 0.0
    %82 = vmatprep.subr.mxu0 0.0
    %83 = vmatpush1.msra.mxu0 0.0
    %84 = vmatprep.subr.mxu0 0.0
    %85 = vmatpush1.msra.mxu0 0.0
    %86 = vmatprep.subr.mxu0 0.0
    %87 = vmatpush1.msra.mxu0 0.0
    %88 = vmatprep.subr.mxu0 0.0
    %89 = vmatpush1.msra.mxu0 0.0
    %90 = vmatprep.subr.mxu0 0.0
    %91 = vmatpush1.msra.mxu0 0.0
    %92 = vmatprep.subr.mxu0 0.0
    %93 = vmatpush1.msra.mxu0 0.0
    %94 = vmatprep.subr.mxu0 0.0
    %95 = vmatpush1.msra.mxu0 0.0
    %96 = vmatprep.subr.mxu0 0.0
    %97 = vmatpush1.msra.mxu0 0.0
    %98 = vmatprep.subr.mxu0 0.0
    %99 = vmatpush1.msra.mxu0 0.0
    %100 = vmatprep.subr.mxu0 0.0
    %101 = vmatpush1.msra.mxu0 0.0
    %102 = vmatprep.subr.mxu0 0.0
    %103 = vmatpush1.msra.mxu0 0.0
    %104 = vmatprep.subr.mxu0 0.0
    %105 = vmatpush1.msra.mxu0 0.0
    %106 = vmatprep.subr.mxu0 0.0
    %107 = vmatpush1.msra.mxu0 0.0
    %108 = vmatprep.subr.mxu0 0.0
    %109 = vmatpush1.msra.mxu0 0.0
    %110 = vmatprep.subr.mxu0 0.0
    %111 = vmatpush1.msra.mxu0 0.0
    %112 = vmatprep.subr.mxu0 0.0
    %113 = vmatpush1.msra.mxu0 0.0
    %114 = vmatprep.subr.mxu0 0.0
    %115 = vmatpush1.msra.mxu0 0.0
    %116 = vmatprep.subr.mxu0 0.0
    %117 = vmatpush1.msra.mxu0 0.0
    %118 = vmatprep.subr.mxu0 0.0
    %119 = vmatpush1.msra.mxu0 0.0
    %120 = vmatprep.subr.mxu0 0.0
    %121 = vmatpush1.msra.mxu0 0.0
    %122 = vmatprep.subr.mxu0 0.0
    %123 = vmatpush1.msra.mxu0 0.0
    %124 = vmatprep.subr.mxu0 0.0
    %125 = vmatpush1.msra.mxu0 0.0
    %126 = vmatprep.subr.mxu0 0.0
    %127 = vmatpush1.msra.mxu0 0.0
    %128 = vmatprep.subr.mxu0 0.0
    %129 = vmatpush1.msra.mxu0 0.0
    %130 = vmatprep.subr.mxu0 0.0
    %131 = vmatpush1.msra.mxu0 0.0
    %132 = vmatprep.subr.mxu0 0.0
    %133 = vmatpush1.msra.mxu0 0.0
    %134 = vmatprep.subr.mxu0 0.0
    %135 = vmatpush1.msra.mxu0 0.0
    %136 = vmatprep.subr.mxu0 0.0
    %137 = vmatpush1.msra.mxu0 0.0
    %138 = vmatprep.subr.mxu0 0.0
    %139 = vmatpush1.msra.mxu0 0.0
    %140 = vmatprep.mubr.f32.mxu0 0.0
    %141 = vmatmul.mubr.f32.gmra.mrb[0].mxu0 %v74
    %v142 = vpop.f32.mrb[0].mxu0
    %v143 = vadd.f32 %v70, %v142
    %v144 = vpop.f32.mrb[0].mxu0
    %145 = vdwg.mxu0
    %v146 = vmax.f32 %v143, 0.0
    %v147 = vld [vmem:[#allocation7] sm:$0xff]
    %v148 = vld [vmem:[#allocation7 + $0x8] sm:$0xff]
    %v149 = vld [vmem:[#allocation7 + $0x10] sm:$0xff]
    %v150 = vld [vmem:[#allocation7 + $0x18] sm:$0xff]
    %v151 = vld [vmem:[#allocation7 + $0x20] sm:$0xff]
    %v152 = vld [vmem:[#allocation7 + $0x28] sm:$0xff]
    %v153 = vld [vmem:[#allocation7 + $0x30] sm:$0xff]
    %v154 = vld [vmem:[#allocation7 + $0x38] sm:$0xff]
    %v155 = vld [vmem:[#allocation7 + $0x40] sm:$0xff]
    %v156 = vld [vmem:[#allocation7 + $0x48] sm:$0xff]
    %v157 = vld [vmem:[#allocation7 + $0x50] sm:$0xff]
    %v158 = vld [vmem:[#allocation7 + $0x58] sm:$0xff]
    %v159 = vld [vmem:[#allocation7 + $0x60] sm:$0xff]
    %v160 = vld [vmem:[#allocation7 + $0x68] sm:$0xff]
    %v161 = vld [vmem:[#allocation7 + $0x70] sm:$0xff]
    %v162 = vld [vmem:[#allocation7 + $0x78] sm:$0xff]
    %v163 = vld [vmem:[%s4] sm:$0x1]
    %v165 = vlaneseq
    %v166 = vshrl.u32 %v165, 7
    %v167 = vsub.s32 0, %v166
    %v168 = vrot.slane %v163, %v167
    %170 = vmatprep.subr.mxu0 0.0
    %171 = vmatpush1.msra.mxu0 %v147
    %172 = vmatprep.subr.mxu0 0.0
    %173 = vmatpush1.msra.mxu0 %v148
    %174 = vmatprep.subr.mxu0 0.0
    %175 = vmatpush1.msra.mxu0 %v149
    %176 = vmatprep.subr.mxu0 0.0
    %177 = vmatpush1.msra.mxu0 %v150
    %178 = vmatprep.subr.mxu0 0.0
    %179 = vmatpush1.msra.mxu0 %v151
    %180 = vmatprep.subr.mxu0 0.0
    %181 = vmatpush1.msra.mxu0 %v152
    %182 = vmatprep.subr.mxu0 0.0
    %183 = vmatpush1.msra.mxu0 %v153
    %184 = vmatprep.subr.mxu0 0.0
    %185 = vmatpush1.msra.mxu0 %v154
    %186 = vmatprep.subr.mxu0 0.0
    %187 = vmatpush1.msra.mxu0 %v155
    %188 = vmatprep.subr.mxu0 0.0
    %189 = vmatpush1.msra.mxu0 %v156
    %190 = vmatprep.subr.mxu0 0.0
    %191 = vmatpush1.msra.mxu0 %v157
    %192 = vmatprep.subr.mxu0 0.0
    %193 = vmatpush1.msra.mxu0 %v158
    %194 = vmatprep.subr.mxu0 0.0
    %195 = vmatpush1.msra.mxu0 %v159
    %196 = vmatprep.subr.mxu0 0.0
    %197 = vmatpush1.msra.mxu0 %v160
    %198 = vmatprep.subr.mxu0 0.0
    %199 = vmatpush1.msra.mxu0 %v161
    %200 = vmatprep.subr.mxu0 0.0
    %201 = vmatpush1.msra.mxu0 %v162
    %202 = vmatprep.subr.mxu0 0.0
    %203 = vmatpush1.msra.mxu0 0.0
    %204 = vmatprep.subr.mxu0 0.0
    %205 = vmatpush1.msra.mxu0 0.0
    %206 = vmatprep.subr.mxu0 0.0
    %207 = vmatpush1.msra.mxu0 0.0
    %208 = vmatprep.subr.mxu0 0.0
    %209 = vmatpush1.msra.mxu0 0.0
    %210 = vmatprep.subr.mxu0 0.0
    %211 = vmatpush1.msra.mxu0 0.0
    %212 = vmatprep.subr.mxu0 0.0
    %213 = vmatpush1.msra.mxu0 0.0
    %214 = vmatprep.subr.mxu0 0.0
    %215 = vmatpush1.msra.mxu0 0.0
    %216 = vmatprep.subr.mxu0 0.0
    %217 = vmatpush1.msra.mxu0 0.0
    %218 = vmatprep.subr.mxu0 0.0
    %219 = vmatpush1.msra.mxu0 0.0
    %220 = vmatprep.subr.mxu0 0.0
    %221 = vmatpush1.msra.mxu0 0.0
    %222 = vmatprep.subr.mxu0 0.0
    %223 = vmatpush1.msra.mxu0 0.0
    %224 = vmatprep.subr.mxu0 0.0
    %225 = vmatpush1.msra.mxu0 0.0
    %226 = vmatprep.subr.mxu0 0.0
    %227 = vmatpush1.msra.mxu0 0.0
    %228 = vmatprep.subr.mxu0 0.0
    %229 = vmatpush1.msra.mxu0 0.0
    %230 = vmatprep.subr.mxu0 0.0
    %231 = vmatpush1.msra.mxu0 0.0
    %232 = vmatprep.subr.mxu0 0.0
    %233 = vmatpush1.msra.mxu0 0.0
    %234 = vmatprep.mubr.f32.mxu0 0.0
    %235 = vmatmul.mubr.f32.gmra.mrb[0].mxu0 %v146
    %v236 = vpop.f32.mrb[0].mxu0
    %v237 = vadd.f32 %v168, %v236
    %v238 = vpop.f32.mrb[0].mxu0
    %239 = vdwg.mxu0
    %240 = vst.msk [vmem:[#allocation8] sm:$0xff] %vm72, %v237
    %v241 = vmin.f32 %v237, 20.0
    %vm242 = vcmp.gt.f32.partialorder %v237, 20.0
    %v243 = vmul.f32 %v241, 1.442695
    %v244 = vpow.pop %v243
    %v245 = vadd.f32 %v244, 1.0
    %v246 = vlog2.pop %v245
    %v247 = vmul.f32 %v246, 0.6931472
    %v248 = vmul.f32 -0.5, %v244
    %v249 = vadd.f32 %v248, 1.0
    %v250 = vmul.f32 %v249, %v244
    %v251 = vand.u32 2147483647, %v244
    %vm252 = vcmp.lt.f32.partialorder %v251, 0.0004427343
    %v253 = vsel %vm252, %v250, %v247
    %v254 = vsel %vm242, %v237, %v253
    %256 = vrot.lane.b32.xlu0 %v254, 112
    %v257 = vpop.permute.xlu0 %256
    %vm259 = vcmask 7168
    %260 = vst.msk [vmem:[%s6] sm:$0xff] %vm259, %v257
    // Predicated region
    $region34: #{tpu_custom_call.1} parent=1 // pred_check
      _
    $region35: #{tpu_custom_call.1} parent=1 // pred_check_branch
      %262 = sbr.rel (0) target = $region37
    $region36: #{tpu_custom_call.1} parent=1 // pred_region
      %s264 = ssub.s32 128, 128
      %265 = vsyncadd [#allocation4], %s264
      %s267 = sshll.u32 [#allocation8], 4
      %s268 = int_to_ptr.vmem [resolvable:$true] %s267
      %270 = dma.vmem_to_hbm [thread:$0]  %s268, 128, %s5, [#allocation4]
    $region37: #{tpu_custom_call.1} parent=1 // pred_fallthru
      _
    // Predicated region
    $region38: #{tpu_custom_call.1} parent=1 // pred_check
      _
    $region39: #{tpu_custom_call.1} parent=1 // pred_check_branch
      %272 = sbr.rel (0) target = $region41
    $region40: #{tpu_custom_call.1} parent=1 // pred_region
      _
    $region41: #{tpu_custom_call.1} parent=1 // pred_fallthru
      _
    // Predicated region
    $region42: #{tpu_custom_call.1} parent=1 // pred_check
      _
    $region43: #{tpu_custom_call.1} parent=1 // pred_check_branch
      %274 = sbr.rel (0) target = $region45
    $region44: #{tpu_custom_call.1} parent=1 // pred_region
      %275 = dma.done [#allocation4], 128
    $region45: #{tpu_custom_call.1} parent=1 // pred_fallthru
      _
    // Predicated region
    $region46: #{tpu_custom_call.1} parent=1 // pred_check
      _
    $region47: #{tpu_custom_call.1} parent=1 // pred_check_branch
      %277 = sbr.rel (0) target = $region49
    $region48: #{tpu_custom_call.1} parent=1 // pred_region
      _
    $region49: #{tpu_custom_call.1} parent=1 // pred_fallthru
      _
    %278 = vsyncpa [#allocation3], 1
    %279 = vsyncpa [#allocation6], 1
    %280 = vsyncpa [#allocation4], 1

</llo_original>
